<compile_context>
chip_gen: v7x
topology: tpu7x:2x2x1
jax: 0.10.0
libtpu: 0.0.40
codegen_flags: <defaults>
</compile_context>

<pallas_src>
import jax
import jax.numpy as jnp
from jax.experimental import pallas as pl
from jax.experimental.pallas import tpu as pltpu


# ---------------------------------------------------------------------------
# Fused Pallas kernel: backbone conv + ReLU + classifier + bilinear upsample
# ---------------------------------------------------------------------------
def fused_seg_kernel(xcol_ref, w1_ref, b1_ref, w2_ref, b2_ref, bmat_ref, out_ref):
    """One batch element per grid step. All matmuls are 2-D and lane-dense.

    xcol_ref : [1, 9*Cin, Ho*Wo] bf16  im2col patches, row order (ky*3+kx)*Cin + cin
    w1_ref   : [Cmid, 9*Cin]     bf16  backbone 3x3 conv weights (same row order)
    b1_ref   : [Cmid, 1]         f32
    w2_ref   : [K, Cmid]         bf16  classifier 1x1 conv weights
    b2_ref   : [K, 1]            f32
    bmat_ref : [Ho*Wo, H*W]      bf16  fused bilinear matrix kron(ay, ax)^T
    out_ref  : [1, K, H*W]       f32   lane-dense output slab
    """
    # Backbone 3x3/stride-2 conv as one MXU contraction over (ky, kx, cin).
    h = jnp.dot(w1_ref[...], xcol_ref[0],
                preferred_element_type=jnp.float32)          # [Cmid, Ho*Wo]
    h = jnp.maximum(h + b1_ref[...], 0.0).astype(jnp.bfloat16)

    # Classifier 1x1 conv.
    y = jnp.dot(w2_ref[...], h,
                preferred_element_type=jnp.float32) + b2_ref[...]   # [K, Ho*Wo] f32

    # Bilinear upsample (align_corners=False): single lane-dense matmul.
    out_ref[0] = jnp.dot(y.astype(jnp.bfloat16), bmat_ref[...],
                         preferred_element_type=jnp.float32)         # [K, H*W]


# ---------------------------------------------------------------------------
# Glue (plain JAX): bilinear interpolation matrices, im2col, parameter prep
# ---------------------------------------------------------------------------
def bilinear_matrix(out_size, in_size):
    """1-D bilinear resize matrix, align_corners=False (matches F.interpolate)."""
    i = jnp.arange(out_size, dtype=jnp.float32)
    src = (i + 0.5) * (in_size / out_size) - 0.5
    src = jnp.maximum(src, 0.0)
    i0 = jnp.minimum(jnp.floor(src).astype(jnp.int32), in_size - 1)
    i1 = jnp.minimum(i0 + 1, in_size - 1)
    w1 = src - i0.astype(jnp.float32)
    w0 = 1.0 - w1
    m = jnp.zeros((out_size, in_size), jnp.float32)
    m = m.at[jnp.arange(out_size), i0].add(w0)
    m = m.at[jnp.arange(out_size), i1].add(w1)
    return m


def simple_segmentation_forward(x, params):
    """x: [N, Cin, H, W] (NCHW, like PyTorch). Returns [N, num_classes, H, W] f32."""
    w1, b1, w2, b2 = params
    N, Cin, H, W = x.shape
    Cmid = w1.shape[0]
    K = w2.shape[0]

    # Conv output size for 3x3 / stride 2 / pad 1.
    Ho = (H + 2 - 3) // 2 + 1
    Wo = (W + 2 - 3) // 2 + 1
    bf = jnp.bfloat16

    # im2col in the wrapper (tiny at these shapes; ~4.6 KB per batch element in bf16).
    xp = jnp.pad(x, ((0, 0), (0, 0), (1, 1), (1, 1)))
    taps = []
    for dy in range(3):
        for dx in range(3):
            taps.append(xp[:, :, dy:dy + 2 * Ho - 1:2, dx:dx + 2 * Wo - 1:2])
    x_col = jnp.concatenate(taps, axis=1).reshape(N, 9 * Cin, Ho * Wo).astype(bf)

    # Weight matrices: row order matches x_col's (ky*3+kx)*Cin + cin flattening.
    w1_mat = w1.transpose(0, 2, 3, 1).reshape(Cmid, 9 * Cin).astype(bf)   # [Cmid, 9*Cin]
    w2_mat = w2.reshape(K, Cmid).astype(bf)                               # [K, Cmid]
    b1_c = b1.reshape(Cmid, 1).astype(jnp.float32)
    b2_c = b2.reshape(K, 1).astype(jnp.float32)

    # Fused bilinear upsample matrix: out2d = y2d @ B, B = kron(ay, ax)^T.
    ay = bilinear_matrix(H, Ho)                         # [H, Ho]
    ax = bilinear_matrix(W, Wo)                         # [W, Wo]
    bmat = jnp.kron(ay, ax).T.astype(bf)                # [Ho*Wo, H*W]

    out2d = pl.pallas_call(
        fused_seg_kernel,
        grid=(N,),
        in_specs=[
            pl.BlockSpec((1, 9 * Cin, Ho * Wo), lambda b: (b, 0, 0)),
            pl.BlockSpec((Cmid, 9 * Cin), lambda b: (0, 0)),
            pl.BlockSpec((Cmid, 1), lambda b: (0, 0)),
            pl.BlockSpec((K, Cmid), lambda b: (0, 0)),
            pl.BlockSpec((K, 1), lambda b: (0, 0)),
            pl.BlockSpec((Ho * Wo, H * W), lambda b: (0, 0)),
        ],
        out_specs=pl.BlockSpec((1, K, H * W), lambda b: (b, 0, 0)),
        out_shape=jax.ShapeDtypeStruct((N, K, H * W), jnp.float32),
        compiler_params=pltpu.CompilerParams(
            dimension_semantics=("parallel",),     # N blocks -> megacore sharding (v7x)
            vmem_limit_bytes=32 * 1024 * 1024,     # safe on v5e/v6e/v7x; usage is KBs
        ),
    )(x_col, w1_mat, b1_c, w2_mat, b2_c, bmat)

    # Free layout plumbing back to NCHW.
    return out2d.reshape(N, K, H, W)


if __name__ == "__main__":
    key = jax.random.PRNGKey(0)
    k1, k2, k3, k4, kx = jax.random.split(key, 5)

    N, Cin, H, W = 2, 4, 16, 16
    Cmid, K = 8, 3   # backbone feature channels, number of segmentation classes

    # Deterministic synthetic parameters (PyTorch-style weight layouts).
    w1 = jax.random.normal(k1, (Cmid, Cin, 3, 3), jnp.float32) * 0.1   # backbone 3x3 conv
    b1 = jax.random.normal(k2, (Cmid,), jnp.float32) * 0.1
    w2 = jax.random.normal(k3, (K, Cmid, 1, 1), jnp.float32) * 0.1     # classifier 1x1 conv
    b2 = jax.random.normal(k4, (K,), jnp.float32) * 0.1

    x = jax.random.normal(kx, (N, Cin, H, W), jnp.float32)

    out = simple_segmentation_forward(x, (w1, b1, w2, b2))
    jax.block_until_ready(out)
    assert out.shape == (N, K, H, W) and out.dtype == jnp.float32
    print("KERNEL_OK")
</pallas_src>

<mosaic_0001>
module attributes {stable_mosaic.version = 11 : i64} {
  func.func @fused_seg_kernel(%arg0: i32, %arg1: memref<1x36x64xbf16, #tpu.memory_space<vmem>>, %arg2: memref<8x36xbf16, #tpu.memory_space<vmem>>, %arg3: memref<8x1xf32, #tpu.memory_space<vmem>>, %arg4: memref<3x8xbf16, #tpu.memory_space<vmem>>, %arg5: memref<3x1xf32, #tpu.memory_space<vmem>>, %arg6: memref<64x256xbf16, #tpu.memory_space<vmem>>, %arg7: memref<1x3x256xf32, #tpu.memory_space<vmem>>) attributes {dimension_semantics = [#tpu.dimension_semantics<parallel>], iteration_bounds = array<i64: 2>, scalar_prefetch = 0 : i64, scratch_operands = 0 : i64, tpu.core_type = #tpu.core_type<tc>, window_params = [{transform_indices = @transform_0, window_bounds = array<i64: 1, 36, 64>}, {pipeline_mode = #tpu.pipeline_mode<synchronous>, transform_indices = @transform_1, window_bounds = array<i64: 8, 36>}, {pipeline_mode = #tpu.pipeline_mode<synchronous>, transform_indices = @transform_2, window_bounds = array<i64: 8, 1>}, {pipeline_mode = #tpu.pipeline_mode<synchronous>, transform_indices = @transform_3, window_bounds = array<i64: 3, 8>}, {pipeline_mode = #tpu.pipeline_mode<synchronous>, transform_indices = @transform_4, window_bounds = array<i64: 3, 1>}, {pipeline_mode = #tpu.pipeline_mode<synchronous>, transform_indices = @transform_5, window_bounds = array<i64: 64, 256>}, {transform_indices = @transform_6, window_bounds = array<i64: 1, 3, 256>}]} {
    %c0 = arith.constant 0 : index
    %c0_0 = arith.constant 0 : index
    %0 = vector.load %arg2[%c0, %c0_0] : memref<8x36xbf16, #tpu.memory_space<vmem>>, vector<8x36xbf16>
    %c0_1 = arith.constant 0 : index
    %c0_2 = arith.constant 0 : index
    %c0_3 = arith.constant 0 : index
    %1 = vector.load %arg1[%c0_1, %c0_2, %c0_3] : memref<1x36x64xbf16, #tpu.memory_space<vmem>>, vector<1x36x64xbf16>
    %2 = vector.shape_cast %1 : vector<1x36x64xbf16> to vector<36x64xbf16>
    %cst = arith.constant dense<0.000000e+00> : vector<8x64xf32>
    %3 = tpu.matmul %0, %2, %cst {dimension_numbers = #tpu.dot_dimension_numbers<[1], [0], [0], [1], [0, 0, 1, 1], [], []>} : vector<8x36xbf16>, vector<36x64xbf16>, vector<8x64xf32> -> vector<8x64xf32>
    %c0_4 = arith.constant 0 : index
    %c0_5 = arith.constant 0 : index
    %4 = vector.load %arg3[%c0_4, %c0_5] : memref<8x1xf32, #tpu.memory_space<vmem>>, vector<8x1xf32>
    %5 = vector.broadcast %4 : vector<8x1xf32> to vector<8x64xf32>
    %6 = arith.addf %3, %5 : vector<8x64xf32>
    %cst_6 = arith.constant 0.000000e+00 : f32
    %7 = vector.broadcast %cst_6 : f32 to vector<8x64xf32>
    %8 = arith.maximumf %6, %7 : vector<8x64xf32>
    %9 = arith.truncf %8 : vector<8x64xf32> to vector<8x64xbf16>
    %c0_7 = arith.constant 0 : index
    %c0_8 = arith.constant 0 : index
    %10 = vector.load %arg4[%c0_7, %c0_8] : memref<3x8xbf16, #tpu.memory_space<vmem>>, vector<3x8xbf16>
    %cst_9 = arith.constant dense<0.000000e+00> : vector<3x64xf32>
    %11 = tpu.matmul %10, %9, %cst_9 {dimension_numbers = #tpu.dot_dimension_numbers<[1], [0], [0], [1], [0, 0, 1, 1], [], []>} : vector<3x8xbf16>, vector<8x64xbf16>, vector<3x64xf32> -> vector<3x64xf32>
    %c0_10 = arith.constant 0 : index
    %c0_11 = arith.constant 0 : index
    %12 = vector.load %arg5[%c0_10, %c0_11] : memref<3x1xf32, #tpu.memory_space<vmem>>, vector<3x1xf32>
    %13 = vector.broadcast %12 : vector<3x1xf32> to vector<3x64xf32>
    %14 = arith.addf %11, %13 : vector<3x64xf32>
    %15 = arith.truncf %14 : vector<3x64xf32> to vector<3x64xbf16>
    %c0_12 = arith.constant 0 : index
    %c0_13 = arith.constant 0 : index
    %16 = vector.load %arg6[%c0_12, %c0_13] : memref<64x256xbf16, #tpu.memory_space<vmem>>, vector<64x256xbf16>
    %cst_14 = arith.constant dense<0.000000e+00> : vector<3x256xf32>
    %17 = tpu.matmul %15, %16, %cst_14 {dimension_numbers = #tpu.dot_dimension_numbers<[1], [0], [0], [1], [0, 0, 1, 1], [], []>} : vector<3x64xbf16>, vector<64x256xbf16>, vector<3x256xf32> -> vector<3x256xf32>
    %c0_15 = arith.constant 0 : index
    %c0_16 = arith.constant 0 : index
    %c0_17 = arith.constant 0 : index
    %18 = vector.load %arg7[%c0_15, %c0_16, %c0_17] : memref<1x3x256xf32, #tpu.memory_space<vmem>>, vector<1x3x256xf32>
    %19 = vector.shape_cast %18 : vector<1x3x256xf32> to vector<3x256xf32>
    %20 = vector.shape_cast %17 : vector<3x256xf32> to vector<1x3x256xf32>
    tpu.vector_store %arg7[%c0_15, %c0_16, %c0_17], %20 {strides = array<i32>} : memref<1x3x256xf32, #tpu.memory_space<vmem>>, vector<1x3x256xf32>,
    return
  }
  func.func @transform_0(%arg0: i32) -> (i32, i32, i32) {
    %c0_i32 = arith.constant 0 : i32
    %c0_i32_0 = arith.constant 0 : i32
    %c0_i32_1 = arith.constant 0 : i32
    return %arg0, %c0_i32, %c0_i32_0 : i32, i32, i32
  }
  func.func @transform_1(%arg0: i32) -> (i32, i32) {
    %c0_i32 = arith.constant 0 : i32
    %c0_i32_0 = arith.constant 0 : i32
    %c0_i32_1 = arith.constant 0 : i32
    return %c0_i32, %c0_i32_0 : i32, i32
  }
  func.func @transform_2(%arg0: i32) -> (i32, i32) {
    %c0_i32 = arith.constant 0 : i32
    %c0_i32_0 = arith.constant 0 : i32
    %c0_i32_1 = arith.constant 0 : i32
    return %c0_i32, %c0_i32_0 : i32, i32
  }
  func.func @transform_3(%arg0: i32) -> (i32, i32) {
    %c0_i32 = arith.constant 0 : i32
    %c0_i32_0 = arith.constant 0 : i32
    %c0_i32_1 = arith.constant 0 : i32
    return %c0_i32, %c0_i32_0 : i32, i32
  }
  func.func @transform_4(%arg0: i32) -> (i32, i32) {
    %c0_i32 = arith.constant 0 : i32
    %c0_i32_0 = arith.constant 0 : i32
    %c0_i32_1 = arith.constant 0 : i32
    return %c0_i32, %c0_i32_0 : i32, i32
  }
  func.func @transform_5(%arg0: i32) -> (i32, i32) {
    %c0_i32 = arith.constant 0 : i32
    %c0_i32_0 = arith.constant 0 : i32
    %c0_i32_1 = arith.constant 0 : i32
    return %c0_i32, %c0_i32_0 : i32, i32
  }
  func.func @transform_6(%arg0: i32) -> (i32, i32, i32) {
    %c0_i32 = arith.constant 0 : i32
    %c0_i32_0 = arith.constant 0 : i32
    %c0_i32_1 = arith.constant 0 : i32
    return %arg0, %c0_i32, %c0_i32_0 : i32, i32, i32
  }
}

</mosaic_0001>

<llo_original>
// kernel: tpu_custom_call.1
$region0: #{tpu_custom_call.1}
  #allocation0 [shape = 'u32[]', space=smem, size = 0x4, offset = 0x4, fixed_abs, tag = 'smem constant byte address 0x4 - core index']
  #allocation1 [shape = 'u32[144,128]{1,0:T(1,128)}', space=vmem, size = 0x12000, scoped, tag = 'internal scratch']
  %s0 = inlined_call_operand.vmem [shape: bf16[2,36,64], index: 0, kind: input, shape index: {}]
  %s1 = inlined_call_operand.vmem [shape: bf16[8,36], index: 1, kind: input, shape index: {}]
  %s2 = inlined_call_operand.vmem [shape: f32[8,1], index: 2, kind: input, shape index: {}]
  %s3 = inlined_call_operand.vmem [shape: bf16[3,8], index: 3, kind: input, shape index: {}]
  %s4 = inlined_call_operand.vmem [shape: f32[3,1], index: 4, kind: input, shape index: {}]
  %s5 = inlined_call_operand.vmem [shape: bf16[64,256], index: 5, kind: input, shape index: {}]
  %s6 = inlined_call_operand.vmem [shape: f32[2,3,256], index: 6, kind: output, shape index: {}]
  %s7 = sld [smem:[#allocation0]]
  $region57: #{tpu_custom_call.1} parent=0
    _
  %s9 = ssub.s32 1, %s7
  %s10 = scalar_select 0, %s9, %s7
  loop: start=0, step=1, limit=4
  $region2: #{tpu_custom_call.1} parent=0 // loop_pre_header
    _
  $region3: #{tpu_custom_call.1} parent=0 // loop_header
    %s12 = sphi 0, %s16
    %p13 = scmp.ge.s32.totalorder %s12, 4
    %s22 = sphi 0, %s24
    %s25 = sphi 0, %s22
    %s26 = sphi 0, %s25
    %s42 = sphi 0, %s26
    %s46 = sphi 0, %s46
    %s48 = sphi 0, %s46
    %s49 = sphi 0, %s48
    %s63 = sphi 0, %s49
    %s67 = sphi 0, %s67
    %s69 = sphi 0, %s67
    %s70 = sphi 0, %s69
    %s84 = sphi 0, %s70
    %s88 = sphi 0, %s88
    %s90 = sphi 0, %s88
    %s91 = sphi 0, %s90
    %s105 = sphi 0, %s91
    %s109 = sphi 0, %s109
    %s111 = sphi 0, %s109
    %s112 = sphi 0, %s111
    %s126 = sphi 0, %s112
    %s130 = sphi 0, %s130
    %s132 = sphi 0, %s130
    %s133 = sphi 0, %s132
    %s147 = sphi 0, %s133
    %s153 = sphi 0, %s155
    %s156 = sphi 0, %s153
    %s157 = sphi 0, %s156
    %s173 = sphi 0, %s157
  $region4: #{tpu_custom_call.1} parent=0 // loop_header_branch
    %15 = sbr.rel (%p13) target = $region8
  $region5: #{tpu_custom_call.1} parent=0 // loop_body
    %s17 = ssub.s32 %s12, 1
    %s18 = ssub.s32 %s12, 2
    %s19 = sadd.s32 %s12, 1
    %s20 = ssub.s32 %s12, %s19
    %p21 = scmp.eq.s32.totalorder %s20, 0
    %s23 = sadd.s32 %s22, 1
    %s24 = scalar_select %p21, %s22, %s23
    %p27 = pneg %p21
    %p28 = scmp.eq.s32.totalorder %s12, 1
    %p29 = por %p27, %p28
    %p30 = scmp.ne.s32.totalorder %s22, %s25
    %p31 = scmp.eq.s32.totalorder %s12, 0
    %p32 = por %p30, %p31
    %p33 = scmp.ne.s32.totalorder %s22, %s25
    %p34 = scmp.eq.s32.totalorder %s17, 1
    %p35 = por %p33, %p34
    %p36 = scmp.ne.s32.totalorder %s25, %s26
    %p37 = scmp.eq.s32.totalorder %s17, 0
    %p38 = por %p36, %p37
    %p39 = scmp.ne.s32.totalorder %s25, %s26
    %p40 = scmp.eq.s32.totalorder %s18, 1
    %p41 = por %p39, %p40
    %p43 = scmp.ne.s32.totalorder %s26, %s42
    %p44 = scmp.eq.s32.totalorder %s18, 0
    %p45 = por %p43, %p44
    %s47 = sadd.s32 %s46, 1
    %p50 = scmp.eq.s32.totalorder %s12, 1
    %p51 = scmp.ne.s32.totalorder %s46, %s48
    %p52 = scmp.eq.s32.totalorder %s12, 0
    %p53 = por %p51, %p52
    %p54 = scmp.ne.s32.totalorder %s46, %s48
    %p55 = scmp.eq.s32.totalorder %s17, 1
    %p56 = por %p54, %p55
    %p57 = scmp.ne.s32.totalorder %s48, %s49
    %p58 = scmp.eq.s32.totalorder %s17, 0
    %p59 = por %p57, %p58
    %p60 = scmp.ne.s32.totalorder %s48, %s49
    %p61 = scmp.eq.s32.totalorder %s18, 1
    %p62 = por %p60, %p61
    %p64 = scmp.ne.s32.totalorder %s49, %s63
    %p65 = scmp.eq.s32.totalorder %s18, 0
    %p66 = por %p64, %p65
    %s68 = sadd.s32 %s67, 1
    %p71 = scmp.eq.s32.totalorder %s12, 1
    %p72 = scmp.ne.s32.totalorder %s67, %s69
    %p73 = scmp.eq.s32.totalorder %s12, 0
    %p74 = por %p72, %p73
    %p75 = scmp.ne.s32.totalorder %s67, %s69
    %p76 = scmp.eq.s32.totalorder %s17, 1
    %p77 = por %p75, %p76
    %p78 = scmp.ne.s32.totalorder %s69, %s70
    %p79 = scmp.eq.s32.totalorder %s17, 0
    %p80 = por %p78, %p79
    %p81 = scmp.ne.s32.totalorder %s69, %s70
    %p82 = scmp.eq.s32.totalorder %s18, 1
    %p83 = por %p81, %p82
    %p85 = scmp.ne.s32.totalorder %s70, %s84
    %p86 = scmp.eq.s32.totalorder %s18, 0
    %p87 = por %p85, %p86
    %s89 = sadd.s32 %s88, 1
    %p92 = scmp.eq.s32.totalorder %s12, 1
    %p93 = scmp.ne.s32.totalorder %s88, %s90
    %p94 = scmp.eq.s32.totalorder %s12, 0
    %p95 = por %p93, %p94
    %p96 = scmp.ne.s32.totalorder %s88, %s90
    %p97 = scmp.eq.s32.totalorder %s17, 1
    %p98 = por %p96, %p97
    %p99 = scmp.ne.s32.totalorder %s90, %s91
    %p100 = scmp.eq.s32.totalorder %s17, 0
    %p101 = por %p99, %p100
    %p102 = scmp.ne.s32.totalorder %s90, %s91
    %p103 = scmp.eq.s32.totalorder %s18, 1
    %p104 = por %p102, %p103
    %p106 = scmp.ne.s32.totalorder %s91, %s105
    %p107 = scmp.eq.s32.totalorder %s18, 0
    %p108 = por %p106, %p107
    %s110 = sadd.s32 %s109, 1
    %p113 = scmp.eq.s32.totalorder %s12, 1
    %p114 = scmp.ne.s32.totalorder %s109, %s111
    %p115 = scmp.eq.s32.totalorder %s12, 0
    %p116 = por %p114, %p115
    %p117 = scmp.ne.s32.totalorder %s109, %s111
    %p118 = scmp.eq.s32.totalorder %s17, 1
    %p119 = por %p117, %p118
    %p120 = scmp.ne.s32.totalorder %s111, %s112
    %p121 = scmp.eq.s32.totalorder %s17, 0
    %p122 = por %p120, %p121
    %p123 = scmp.ne.s32.totalorder %s111, %s112
    %p124 = scmp.eq.s32.totalorder %s18, 1
    %p125 = por %p123, %p124
    %p127 = scmp.ne.s32.totalorder %s112, %s126
    %p128 = scmp.eq.s32.totalorder %s18, 0
    %p129 = por %p127, %p128
    %s131 = sadd.s32 %s130, 1
    %p134 = scmp.eq.s32.totalorder %s12, 1
    %p135 = scmp.ne.s32.totalorder %s130, %s132
    %p136 = scmp.eq.s32.totalorder %s12, 0
    %p137 = por %p135, %p136
    %p138 = scmp.ne.s32.totalorder %s130, %s132
    %p139 = scmp.eq.s32.totalorder %s17, 1
    %p140 = por %p138, %p139
    %p141 = scmp.ne.s32.totalorder %s132, %s133
    %p142 = scmp.eq.s32.totalorder %s17, 0
    %p143 = por %p141, %p142
    %p144 = scmp.ne.s32.totalorder %s132, %s133
    %p145 = scmp.eq.s32.totalorder %s18, 1
    %p146 = por %p144, %p145
    %p148 = scmp.ne.s32.totalorder %s133, %s147
    %p149 = scmp.eq.s32.totalorder %s18, 0
    %p150 = por %p148, %p149
    %s151 = ssub.s32 %s12, %s19
    %p152 = scmp.eq.s32.totalorder %s151, 0
    %s154 = sadd.s32 %s153, 1
    %s155 = scalar_select %p152, %s153, %s154
    %p158 = pneg %p152
    %p159 = scmp.eq.s32.totalorder %s12, 1
    %p160 = por %p158, %p159
    %p161 = scmp.ne.s32.totalorder %s153, %s156
    %p162 = scmp.eq.s32.totalorder %s12, 0
    %p163 = por %p161, %p162
    %p164 = scmp.ne.s32.totalorder %s153, %s156
    %p165 = scmp.eq.s32.totalorder %s17, 1
    %p166 = por %p164, %p165
    %p167 = scmp.ne.s32.totalorder %s156, %s157
    %p168 = scmp.eq.s32.totalorder %s17, 0
    %p169 = por %p167, %p168
    %p170 = scmp.ne.s32.totalorder %s156, %s157
    %p171 = scmp.eq.s32.totalorder %s18, 1
    %p172 = por %p170, %p171
    %p174 = scmp.ne.s32.totalorder %s157, %s173
    %p175 = scmp.eq.s32.totalorder %s18, 0
    %p176 = por %p174, %p175
    %p177 = scmp.le.s32.totalorder 1, %s12
    %p178 = scmp.lt.s32.totalorder %s12, 3
    %p179 = pnand %p177, %p178
    %p180 = pneg %p179
    // Predicated region
    $region9: #{tpu_custom_call.1} parent=5 // pred_check
      _
    $region10: #{tpu_custom_call.1} parent=5 // pred_check_branch
      %182 = sbr.rel (%p179) target = $region12
    $region11: #{tpu_custom_call.1} parent=5 // pred_region
      %s183 = ssub.s32 %s12, 1
      // Predicated region
      $region13: #{tpu_custom_call.1} parent=11 // pred_check
        %p184 = pneg %p59
      $region14: #{tpu_custom_call.1} parent=11 // pred_check_branch
        %186 = sbr.rel (%p184) target = $region16
      $region15: #{tpu_custom_call.1} parent=11 // pred_region
        _
      $region16: #{tpu_custom_call.1} parent=11 // pred_fallthru
        _
      // Predicated region
      $region17: #{tpu_custom_call.1} parent=11 // pred_check
        %p187 = pneg %p80
      $region18: #{tpu_custom_call.1} parent=11 // pred_check_branch
        %189 = sbr.rel (%p187) target = $region20
      $region19: #{tpu_custom_call.1} parent=11 // pred_region
        _
      $region20: #{tpu_custom_call.1} parent=11 // pred_fallthru
        _
      // Predicated region
      $region21: #{tpu_custom_call.1} parent=11 // pred_check
        %p190 = pneg %p101
      $region22: #{tpu_custom_call.1} parent=11 // pred_check_branch
        %192 = sbr.rel (%p190) target = $region24
      $region23: #{tpu_custom_call.1} parent=11 // pred_region
        _
      $region24: #{tpu_custom_call.1} parent=11 // pred_fallthru
        _
      // Predicated region
      $region25: #{tpu_custom_call.1} parent=11 // pred_check
        %p193 = pneg %p122
      $region26: #{tpu_custom_call.1} parent=11 // pred_check_branch
        %195 = sbr.rel (%p193) target = $region28
      $region27: #{tpu_custom_call.1} parent=11 // pred_region
        _
      $region28: #{tpu_custom_call.1} parent=11 // pred_fallthru
        _
      // Predicated region
      $region29: #{tpu_custom_call.1} parent=11 // pred_check
        %p196 = pneg %p143
      $region30: #{tpu_custom_call.1} parent=11 // pred_check_branch
        %198 = sbr.rel (%p196) target = $region32
      $region31: #{tpu_custom_call.1} parent=11 // pred_region
        _
      $region32: #{tpu_custom_call.1} parent=11 // pred_fallthru
        _
    $region12: #{tpu_custom_call.1} parent=5 // pred_fallthru
      _
    %p199 = scmp.lt.s32.totalorder %s12, 2
    // Predicated region
    $region33: #{tpu_custom_call.1} parent=5 // pred_check
      %p200 = pneg %p199
    $region34: #{tpu_custom_call.1} parent=5 // pred_check_branch
      %202 = sbr.rel (%p200) target = $region36
    $region35: #{tpu_custom_call.1} parent=5 // pred_region
      // Predicated region
      $region37: #{tpu_custom_call.1} parent=35 // pred_check
        %p203 = pneg %p32
      $region38: #{tpu_custom_call.1} parent=35 // pred_check_branch
        %205 = sbr.rel (%p203) target = $region40
      $region39: #{tpu_custom_call.1} parent=35 // pred_region
        %p206 = scmp.lt.s32.totalorder %s12, 1
        %s207 = scalar_select %p206, %s12, 1
        %s208 = smul.addr %s207, 5
        %s209 = smul.addr %s208, 4
        %s210 = scalar_lea.vmem %s0, %s209
      $region40: #{tpu_custom_call.1} parent=35 // pred_fallthru
        _
    $region36: #{tpu_custom_call.1} parent=5 // pred_fallthru
      _
    %p211 = scmp.le.s32.totalorder 1, %s12
    %p212 = scmp.lt.s32.totalorder %s12, 3
    %p213 = pnand %p211, %p212
    %p214 = pneg %p213
    // Predicated region
    $region41: #{tpu_custom_call.1} parent=5 // pred_check
      _
    $region42: #{tpu_custom_call.1} parent=5 // pred_check_branch
      %216 = sbr.rel (%p213) target = $region44
    $region43: #{tpu_custom_call.1} parent=5 // pred_region
      %s217 = ssub.s32 %s12, 1
      %p218 = scmp.lt.s32.totalorder %s17, 1
      %s219 = scalar_select %p218, %s17, 1
      %s220 = smul.addr %s219, 5
      %s221 = smul.addr %s220, 4
      %s222 = scalar_lea.vmem %s0, %s221
      %p223 = pneg %p38
      %p224 = pneg %p35
      %p225 = pneg %p59
      %p226 = pneg %p56
      %p227 = pneg %p80
      %p228 = pneg %p77
      %p229 = pneg %p101
      %p230 = pneg %p98
      %p231 = pneg %p122
      %p232 = pneg %p119
      %p233 = pneg %p143
      %p234 = pneg %p140
      %p235 = pneg %p169
      %p236 = pneg %p166
      %p237 = scmp.lt.s32.totalorder %s17, 1
      %s238 = scalar_select %p237, %s17, 1
      %s239 = smul.addr %s238, 2
      %s240 = smul.addr %s239, 4
      %s241 = scalar_lea.vmem %s6, %s240
      %p242 = scmp.lt.s32.totalorder %s17, 1
      %s243 = scalar_select %p242, %s17, 1
      %s244 = smul.addr %s243, 5
      %s245 = smul.addr %s244, 4
      %s246 = scalar_lea.vmem %s0, %s245
      %p247 = scmp.lt.s32.totalorder %s17, 1
      %s248 = scalar_select %p247, %s17, 1
      %s249 = smul.addr %s248, 2
      %s250 = smul.addr %s249, 4
      %s251 = scalar_lea.vmem %s6, %s250
      %v253 = vld [vmem:[%s1] sm:$0xf]
      %v254 = vld [vmem:[%s246] sm:$0xf]
      %v255 = vld [vmem:[%s246 + $0x4] sm:$0xf]
      %v256 = vld [vmem:[%s246 + $0x8] sm:$0xf]
      %v257 = vld [vmem:[%s246 + $0xc] sm:$0xf]
      %v258 = vld [vmem:[%s246 + $0x10] sm:$0x3]
      %v259 = vld [vmem:[%s2] sm:$0xff]
      %261 = vset.pattern.permute.xlu0 0
      %262 = vperm.xlu0 %261, %v259
      %v263 = vpop.permute.xlu0 %262
      %v270 = vunpack.c.l.b16 %v254
      %v271 = vunpack.c.l.b16 %v255
      %v272 = vunpack.c.l.b16 %v256
      %v273 = vunpack.c.l.b16 %v257
      %v274 = vunpack.c.l.b16 %v258
      %v275 = vpack.c.b16 %v271, %v270
      %v276 = vpack.c.b16 %v273, %v272
      %v277 = vpack.c.b16 %v274, %v274
      %vm280 = vcmask 293888
      %v282 = vsel %vm280, %v253, 0
      %vm284 = vcmask 1041408
      %v286 = vsel %vm284, %v277, 0
      %288 = vmatprep.subr.bf16.mxu0 0
      %289 = vmatpush1.bf16.msra.mxu0 %v275
      %290 = vmatprep.subr.bf16.mxu0 0
      %291 = vmatpush1.bf16.msra.mxu0 %v276
      %292 = vmatprep.subr.bf16.mxu0 0
      %293 = vmatpush1.bf16.msra.mxu0 %v286
      %294 = vmatprep.subr.bf16.mxu0 0
      %295 = vmatpush1.bf16.msra.mxu0 0
      %296 = vmatprep.subr.bf16.mxu0 0
      %297 = vmatpush1.bf16.msra.mxu0 0
      %298 = vmatprep.subr.bf16.mxu0 0
      %299 = vmatpush1.bf16.msra.mxu0 0
      %300 = vmatprep.subr.bf16.mxu0 0
      %301 = vmatpush1.bf16.msra.mxu0 0
      %302 = vmatprep.subr.bf16.mxu0 0
      %303 = vmatpush1.bf16.msra.mxu0 0
      %304 = vmatprep.subr.bf16.mxu0 0
      %305 = vmatpush1.bf16.msra.mxu0 0
      %306 = vmatprep.subr.bf16.mxu0 0
      %307 = vmatpush1.bf16.msra.mxu0 0
      %308 = vmatprep.subr.bf16.mxu0 0
      %309 = vmatpush1.bf16.msra.mxu0 0
      %310 = vmatprep.subr.bf16.mxu0 0
      %311 = vmatpush1.bf16.msra.mxu0 0
      %312 = vmatprep.subr.bf16.mxu0 0
      %313 = vmatpush1.bf16.msra.mxu0 0
      %314 = vmatprep.subr.bf16.mxu0 0
      %315 = vmatpush1.bf16.msra.mxu0 0
      %316 = vmatprep.subr.bf16.mxu0 0
      %317 = vmatpush1.bf16.msra.mxu0 0
      %318 = vmatprep.subr.bf16.mxu0 0
      %319 = vmatpush1.bf16.msra.mxu0 0
      %320 = vmatprep.mubr.bf16.mxu0 0
      %321 = vmatmul.mubr.bf16.gmra.mrb[0].mxu0 %v282
      %v322 = vpop.f32.mrb[0].mxu0
      %v323 = vadd.f32 %v263, %v322
      %v324 = vpop.f32.mrb[0].mxu0
      %v325 = vpop.f32.mrb[0].mxu0
      %v326 = vpop.f32.mrb[0].mxu0
      %327 = vdwg.mxu0
      %v328 = vmax.f32 %v323, 0.0
      %v329 = vpack.c.bf16 %v328, %v328
      %v330 = vld [vmem:[%s3] sm:$0x3]
      %v331 = vld [vmem:[%s4] sm:$0x7]
      %333 = vset.pattern.permute.xlu0 0
      %334 = vperm.xlu0 %333, %v331
      %v335 = vpop.permute.xlu0 %334
      %vm337 = vcmask 64512
      %v339 = vsel %vm337, %v330, 0
      %vm341 = vcmask 1043456
      %v343 = vsel %vm341, %v329, 0
      %345 = vmatprep.subr.bf16.mxu0 0
      %346 = vmatpush1.bf16.msra.mxu0 %v343
      %347 = vmatprep.subr.bf16.mxu0 0
      %348 = vmatpush1.bf16.msra.mxu0 0
      %349 = vmatprep.subr.bf16.mxu0 0
      %350 = vmatpush1.bf16.msra.mxu0 0
      %351 = vmatprep.subr.bf16.mxu0 0
      %352 = vmatpush1.bf16.msra.mxu0 0
      %353 = vmatprep.subr.bf16.mxu0 0
      %354 = vmatpush1.bf16.msra.mxu0 0
      %355 = vmatprep.subr.bf16.mxu0 0
      %356 = vmatpush1.bf16.msra.mxu0 0
      %357 = vmatprep.subr.bf16.mxu0 0
      %358 = vmatpush1.bf16.msra.mxu0 0
      %359 = vmatprep.subr.bf16.mxu0 0
      %360 = vmatpush1.bf16.msra.mxu0 0
      %361 = vmatprep.subr.bf16.mxu0 0
      %362 = vmatpush1.bf16.msra.mxu0 0
      %363 = vmatprep.subr.bf16.mxu0 0
      %364 = vmatpush1.bf16.msra.mxu0 0
      %365 = vmatprep.subr.bf16.mxu0 0
      %366 = vmatpush1.bf16.msra.mxu0 0
      %367 = vmatprep.subr.bf16.mxu0 0
      %368 = vmatpush1.bf16.msra.mxu0 0
      %369 = vmatprep.subr.bf16.mxu0 0
      %370 = vmatpush1.bf16.msra.mxu0 0
      %371 = vmatprep.subr.bf16.mxu0 0
      %372 = vmatpush1.bf16.msra.mxu0 0
      %373 = vmatprep.subr.bf16.mxu0 0
      %374 = vmatpush1.bf16.msra.mxu0 0
      %375 = vmatprep.subr.bf16.mxu0 0
      %376 = vmatpush1.bf16.msra.mxu0 0
      %377 = vmatprep.mubr.bf16.mxu0 0
      %378 = vmatmul.mubr.bf16.gmra.mrb[0].mxu0 %v339
      %v379 = vpop.f32.mrb[0].mxu0
      %v380 = vadd.f32 %v335, %v379
      %v381 = vpop.f32.mrb[0].mxu0
      %v382 = vpop.f32.mrb[0].mxu0
      %v383 = vpop.f32.mrb[0].mxu0
      %384 = vdwg.mxu0
      %v385 = vpack.c.bf16 %v380, %v380
      %v386 = vld [vmem:[%s5] sm:$0xff]
      %v387 = vld [vmem:[%s5 + $0x8] sm:$0xff]
      %v388 = vld [vmem:[%s5 + $0x10] sm:$0xff]
      %v389 = vld [vmem:[%s5 + $0x18] sm:$0xff]
      %v390 = vld [vmem:[%s5 + $0x20] sm:$0xff]
      %v391 = vld [vmem:[%s5 + $0x28] sm:$0xff]
      %v392 = vld [vmem:[%s5 + $0x30] sm:$0xff]
      %v393 = vld [vmem:[%s5 + $0x38] sm:$0xff]
      %v402 = vunpack.c.l.b16 %v386
      %v403 = vunpack.c.h.b16 %v386
      %v404 = vunpack.c.l.b16 %v387
      %v405 = vunpack.c.h.b16 %v387
      %v406 = vunpack.c.l.b16 %v388
      %v407 = vunpack.c.h.b16 %v388
      %v408 = vunpack.c.l.b16 %v389
      %v409 = vunpack.c.h.b16 %v389
      %v410 = vunpack.c.l.b16 %v390
      %v411 = vunpack.c.h.b16 %v390
      %v412 = vunpack.c.l.b16 %v391
      %v413 = vunpack.c.h.b16 %v391
      %v414 = vunpack.c.l.b16 %v392
      %v415 = vunpack.c.h.b16 %v392
      %v416 = vunpack.c.l.b16 %v393
      %v417 = vunpack.c.h.b16 %v393
      %v418 = vpack.c.b16 %v404, %v402
      %v419 = vpack.c.b16 %v405, %v403
      %v420 = vpack.c.b16 %v408, %v406
      %v421 = vpack.c.b16 %v409, %v407
      %v422 = vpack.c.b16 %v412, %v410
      %v423 = vpack.c.b16 %v413, %v411
      %v424 = vpack.c.b16 %v416, %v414
      %v425 = vpack.c.b16 %v417, %v415
      %vm434 = vcmask 523264
      %v436 = vsel %vm434, %v385, 0
      %438 = vmatprep.subr.bf16.mxu0 %v419
      %439 = vmatpush1.bf16.msra.mxu0 %v418
      %440 = vmatprep.subr.bf16.mxu0 %v421
      %441 = vmatpush1.bf16.msra.mxu0 %v420
      %442 = vmatprep.subr.bf16.mxu0 %v423
      %443 = vmatpush1.bf16.msra.mxu0 %v422
      %444 = vmatprep.subr.bf16.mxu0 %v425
      %445 = vmatpush1.bf16.msra.mxu0 %v424
      %446 = vmatprep.subr.bf16.mxu0 0
      %447 = vmatpush1.bf16.msra.mxu0 0
      %448 = vmatprep.subr.bf16.mxu0 0
      %449 = vmatpush1.bf16.msra.mxu0 0
      %450 = vmatprep.subr.bf16.mxu0 0
      %451 = vmatpush1.bf16.msra.mxu0 0
      %452 = vmatprep.subr.bf16.mxu0 0
      %453 = vmatpush1.bf16.msra.mxu0 0
      %454 = vmatprep.subr.bf16.mxu0 0
      %455 = vmatpush1.bf16.msra.mxu0 0
      %456 = vmatprep.subr.bf16.mxu0 0
      %457 = vmatpush1.bf16.msra.mxu0 0
      %458 = vmatprep.subr.bf16.mxu0 0
      %459 = vmatpush1.bf16.msra.mxu0 0
      %460 = vmatprep.subr.bf16.mxu0 0
      %461 = vmatpush1.bf16.msra.mxu0 0
      %462 = vmatprep.subr.bf16.mxu0 0
      %463 = vmatpush1.bf16.msra.mxu0 0
      %464 = vmatprep.subr.bf16.mxu0 0
      %465 = vmatpush1.bf16.msra.mxu0 0
      %466 = vmatprep.subr.bf16.mxu0 0
      %467 = vmatpush1.bf16.msra.mxu0 0
      %468 = vmatprep.subr.bf16.mxu0 0
      %469 = vmatpush1.bf16.msra.mxu0 0
      %470 = vmatprep.mubr.bf16.mxu0 0
      %471 = vmatmul.mubr.bf16.gmra.mrb[0].mxu0 %v436
      %v472 = vpop.f32.mrb[0].mxu0
      %v473 = vadd.f32 0.0, %v472
      %v474 = vpop.f32.mrb[0].mxu0
      %v475 = vadd.f32 0.0, %v474
      %v476 = vpop.f32.mrb[0].mxu0
      %v477 = vpop.f32.mrb[0].mxu0
      %478 = vdwg.mxu0
      %v481 = vcombine.low %v473, %v475
      %483 = vst [vmem:[%s251] sm:$0x77] %v481
      %p484 = scmp.lt.s32.totalorder %s17, 1
      %s485 = scalar_select %p484, %s17, 1
      %s486 = smul.addr %s485, 2
      %s487 = smul.addr %s486, 4
      %s488 = scalar_lea.vmem %s6, %s487
      // Predicated region
      $region45: #{tpu_custom_call.1} parent=43 // pred_check
        %p489 = pneg %p166
      $region46: #{tpu_custom_call.1} parent=43 // pred_check_branch
        %491 = sbr.rel (%p489) target = $region48
      $region47: #{tpu_custom_call.1} parent=43 // pred_region
        _
      $region48: #{tpu_custom_call.1} parent=43 // pred_fallthru
        _
    $region44: #{tpu_custom_call.1} parent=5 // pred_fallthru
      _
    %p492 = scmp.le.s32.totalorder 2, %s12
    // Predicated region
    $region49: #{tpu_custom_call.1} parent=5 // pred_check
      %p493 = pneg %p492
    $region50: #{tpu_custom_call.1} parent=5 // pred_check_branch
      %495 = sbr.rel (%p493) target = $region52
    $region51: #{tpu_custom_call.1} parent=5 // pred_region
      %s496 = ssub.s32 %s12, 2
      // Predicated region
      $region53: #{tpu_custom_call.1} parent=51 // pred_check
        %p497 = pneg %p172
      $region54: #{tpu_custom_call.1} parent=51 // pred_check_branch
        %499 = sbr.rel (%p497) target = $region56
      $region55: #{tpu_custom_call.1} parent=51 // pred_region
        %p500 = scmp.lt.s32.totalorder %s18, 1
        %s501 = scalar_select %p500, %s18, 1
        %s502 = smul.addr %s501, 2
        %s503 = smul.addr %s502, 4
        %s504 = scalar_lea.vmem %s6, %s503
      $region56: #{tpu_custom_call.1} parent=51 // pred_fallthru
        _
    $region52: #{tpu_custom_call.1} parent=5 // pred_fallthru
      _
  $region6: #{tpu_custom_call.1} parent=0 // loop_footer
    %s16 = sadd.s32 1, %s12
  $region7: #{tpu_custom_call.1} parent=0 // loop_footer_branch
    %11 = sbr.rel target = $region3
  $region8: #{tpu_custom_call.1} parent=0 // loop_exit
    _

</llo_original>
